<compile_context>
chip_gen: v6e
topology: v6e:2x2x1
jax: 0.10.0
libtpu: 0.0.40
codegen_flags: <defaults>
</compile_context>

<pallas_src>
import numpy as np
import jax
import jax.numpy as jnp
from jax.experimental import pallas as pl
from jax.experimental.pallas import tpu as pltpu

# ----------------------------- config (small synthetic sizes, MXU-friendly)
BATCH = 256
IN_DIM = 256
OUT_DIM = 256
SPARSITY = 0.02
PATCH_DENSITY = 0.2
PATCH_SIZE = 8

_VMEM_WORKING_SET_CAP = 16 * 1024 * 1024   # conservative per-tile budget (bytes)


def _round_up(x, m):
    return ((x + m - 1) // m) * m


def _num_tensorcores_per_chip():
    """Best-effort TensorCore count per chip (v5e/v6e: 1, v4/v5p/v7x: 2)."""
    try:
        kind = jax.devices()[0].device_kind.lower()
    except Exception:
        return 1
    if any(s in kind for s in ("v5 lite", "v5e", "v5litepod", "v6 lite", "v6e")):
        return 1
    if any(s in kind for s in ("v7", "v5p", "v4")):
        return 2
    return 1


# ----------------------------- deterministic "compactification" (host init glue)
# TODO(synk): the Sobel/local-maxima ExtremaDetector is replaced by a deterministic
# magnitude-based patch selection; the CSR skeleton is kept as a dense (mostly-zero)
# numpy matrix (identical values) since it is folded into W_eff below.
def compactify(W, patch_size, patch_density, sparsity):
    W = W.copy()
    out_dim, in_dim = W.shape
    total = W.size
    target_active = int(total * sparsity)
    params_per_patch = patch_size * patch_size * patch_density
    target_patches = max(1, int(target_active * 0.75 / params_per_patch))

    # candidate patch locations on a patch_size-strided grid, scored by mean |W|
    candidates = []
    for r in range(0, out_dim - patch_size + 1, patch_size):
        for c in range(0, in_dim - patch_size + 1, patch_size):
            score = float(np.abs(W[r:r + patch_size, c:c + patch_size]).mean())
            candidates.append((score, r, c))
    candidates.sort(key=lambda t: (-t[0], t[1], t[2]))
    positions = [(r, c) for _, r, c in candidates[:target_patches]]

    # extract + sparsify patches (top-k by magnitude), zero them out of W
    k_patch = int(patch_size * patch_size * patch_density)
    patches = []
    for (r, c) in positions:
        region = W[r:r + patch_size, c:c + patch_size].copy()
        flat = region.reshape(-1)
        mags = np.abs(flat)
        if k_patch > 0:
            thresh = np.sort(mags)[::-1][k_patch - 1]
            sp_flat = np.where(mags >= thresh, flat, 0.0)
        else:
            sp_flat = np.zeros_like(flat)
        patches.append(sp_flat.reshape(patch_size, patch_size).astype(np.float32))
        W[r:r + patch_size, c:c + patch_size] = 0.0

    # skeleton: top-k of remaining magnitudes within the sparsity budget
    patch_nnz = sum(int((p != 0).sum()) for p in patches)
    budget = int(total * sparsity) - patch_nnz
    skeleton = np.zeros_like(W, dtype=np.float32)
    if budget > 0:
        flat = W.reshape(-1)
        mags = np.abs(flat)
        k = min(budget, int((mags > 0).sum()))
        if k > 0:
            thresh = np.sort(mags)[::-1][k - 1]
            sk_flat = np.where(mags >= thresh, flat, 0.0)
            skeleton = sk_flat.reshape(W.shape).astype(np.float32)
    return positions, patches, skeleton


def build_effective_weight(positions, patches, skeleton, patch_size):
    """Fold the static patches into the skeleton: W_eff = skeleton + scatter(patches)."""
    W_eff = skeleton.astype(np.float32).copy()
    for (r, c), p in zip(positions, patches):
        W_eff[r:r + patch_size, c:c + patch_size] += p
    return W_eff                                   # (OUT, IN)


def pack_kernel_params(positions, patches, skeleton, bias, patch_size):
    """Host-side packing: folded, pre-transposed bf16 weight padded to lane-dense OUT."""
    W_eff = build_effective_weight(positions, patches, skeleton, patch_size)   # (OUT, IN)
    out_dim, in_dim = W_eff.shape
    out_p = _round_up(out_dim, 128)                # lane-dense, unmasked stores
    w_t = np.zeros((in_dim, out_p), np.float32)
    w_t[:, :out_dim] = W_eff.T
    b2d = np.zeros((1, out_p), np.float32)
    b2d[0, :out_dim] = bias
    return jnp.asarray(w_t).astype(jnp.bfloat16), jnp.asarray(b2d), out_dim


# ----------------------------- Pallas kernel: one MXU matmul + bias per tile
def compact_layer_kernel(x_ref, w_ref, bias_ref, o_ref):
    x = x_ref[...].astype(jnp.bfloat16)            # (tb, IN)  bf16 MXU inputs
    o_ref[...] = jnp.dot(x, w_ref[...],            # (IN, tn)  bf16 folded weights
                         preferred_element_type=jnp.float32) + bias_ref[...]


def _pick_tiles(B, IN, OUT_p, num_tc):
    """Choose (tb, Bp, tn) per the perf review: one grid step per TensorCore,
    lane-dense output tiles, working set well under the scoped VMEM limit."""
    Bp = _round_up(max(B, 1), 8)
    if num_tc > 1:
        tb = _round_up(-(-Bp // num_tc), 8)        # split batch across TCs
        Bp = _round_up(Bp, tb)
    else:
        tb = Bp                                    # single grid step on v5e/v6e

    def working_set_bytes(tn):
        # double-buffered: x (f32) + weights (bf16) + bias (f32) + out (f32)
        return 2 * (tb * IN * 4 + IN * tn * 2 + tn * 4 + tb * tn * 4)

    tn = OUT_p
    for cand in [OUT_p, 4096, 2048, 1024, 512, 256, 128]:
        if cand <= OUT_p and OUT_p % cand == 0 and working_set_bytes(cand) <= _VMEM_WORKING_SET_CAP:
            tn = cand
            break
    return tb, Bp, tn


def compact_layer_forward(x, w_eff_t_bf16, bias2d, out_dim):
    B, IN = x.shape
    IN_w, OUT_p = w_eff_t_bf16.shape
    assert IN == IN_w and OUT_p % 128 == 0

    num_tc = _num_tensorcores_per_chip()
    tb, Bp, tn = _pick_tiles(B, IN, OUT_p, num_tc)

    if Bp != B:                                    # pad batch to the tile size
        x = jnp.pad(x, ((0, Bp - B), (0, 0)))

    grid = (Bp // tb, OUT_p // tn)
    out = pl.pallas_call(
        compact_layer_kernel,
        out_shape=jax.ShapeDtypeStruct((Bp, OUT_p), jnp.float32),
        grid=grid,
        in_specs=[
            pl.BlockSpec((tb, IN), lambda i, j: (i, 0)),    # x tile (f32, cast in-kernel)
            pl.BlockSpec((IN, tn), lambda i, j: (0, j)),    # folded weight tile (bf16)
            pl.BlockSpec((1, tn), lambda i, j: (0, j)),     # bias tile (f32)
        ],
        out_specs=pl.BlockSpec((tb, tn), lambda i, j: (i, j)),
        compiler_params=pltpu.CompilerParams(
            dimension_semantics=("parallel", "parallel")),  # shards batch tiles across TCs
    )(x, w_eff_t_bf16, bias2d)
    return out[:B, :out_dim]


# ----------------------------- pure-JAX reference (mirrors the torch forward path)
def forward_ref(x, patch_positions, patches, skeleton, bias):
    out = jnp.zeros((x.shape[0], skeleton.shape[0]), jnp.float32)
    for (r, c), p in zip(patch_positions, patches):
        out = out.at[:, r:r + PATCH_SIZE].add(x[:, c:c + PATCH_SIZE] @ p.T)
    out = out + x @ skeleton.T
    out = out + bias
    return out


if __name__ == "__main__":
    key = jax.random.PRNGKey(0)
    k_w, k_x = jax.random.split(key)

    # CompactLayer.__init__: initial weight ~ N(0, 0.01), then compactified
    W0 = np.asarray(0.01 * jax.random.normal(k_w, (OUT_DIM, IN_DIM), jnp.float32))
    positions, patches_np, skeleton_np = compactify(
        W0, PATCH_SIZE, PATCH_DENSITY, SPARSITY)
    bias_np = np.zeros((OUT_DIM,), np.float32)

    # kernel-side parameter layout: patches folded, pre-transposed, bf16, lane-padded OUT
    w_eff_t, bias2d, out_dim = pack_kernel_params(
        positions, patches_np, skeleton_np, bias_np, PATCH_SIZE)

    x = jax.random.normal(k_x, (BATCH, IN_DIM), jnp.float32)

    out = compact_layer_forward(x, w_eff_t, bias2d, out_dim)
    out = jax.block_until_ready(out)

    ref = forward_ref(x, positions, [jnp.asarray(p) for p in patches_np],
                      jnp.asarray(skeleton_np), jnp.asarray(bias_np))
    assert out.shape == (BATCH, OUT_DIM) and out.dtype == jnp.float32
    # bf16 weights/activations in the kernel vs f32 reference -> loosened tolerance
    np.testing.assert_allclose(np.asarray(out), np.asarray(ref),
                               rtol=5e-2, atol=5e-3)
    print("KERNEL_OK")
</pallas_src>

<mosaic_0001>
module attributes {stable_mosaic.version = 11 : i64} {
  func.func @compact_layer_kernel(%arg0: i32, %arg1: i32, %arg2: memref<256x256xf32, #tpu.memory_space<vmem>>, %arg3: memref<256x256xbf16, #tpu.memory_space<vmem>>, %arg4: memref<1x256xf32, #tpu.memory_space<vmem>>, %arg5: memref<256x256xf32, #tpu.memory_space<vmem>>) attributes {dimension_semantics = [#tpu.dimension_semantics<parallel>, #tpu.dimension_semantics<parallel>], iteration_bounds = array<i64: 1, 1>, scalar_prefetch = 0 : i64, scratch_operands = 0 : i64, tpu.core_type = #tpu.core_type<tc>, window_params = [{transform_indices = @transform_0, window_bounds = array<i64: 256, 256>}, {transform_indices = @transform_1, window_bounds = array<i64: 256, 256>}, {transform_indices = @transform_2, window_bounds = array<i64: 1, 256>}, {transform_indices = @transform_3, window_bounds = array<i64: 256, 256>}]} {
    %c0 = arith.constant 0 : index
    %c0_0 = arith.constant 0 : index
    %0 = vector.load %arg2[%c0, %c0_0] : memref<256x256xf32, #tpu.memory_space<vmem>>, vector<256x256xf32>
    %1 = arith.truncf %0 : vector<256x256xf32> to vector<256x256xbf16>
    %c0_1 = arith.constant 0 : index
    %c0_2 = arith.constant 0 : index
    %2 = vector.load %arg3[%c0_1, %c0_2] : memref<256x256xbf16, #tpu.memory_space<vmem>>, vector<256x256xbf16>
    %cst = arith.constant dense<0.000000e+00> : vector<256x256xf32>
    %3 = tpu.matmul %1, %2, %cst {dimension_numbers = #tpu.dot_dimension_numbers<[1], [0], [0], [1], [0, 0, 1, 1], [], []>} : vector<256x256xbf16>, vector<256x256xbf16>, vector<256x256xf32> -> vector<256x256xf32>
    %c0_3 = arith.constant 0 : index
    %c0_4 = arith.constant 0 : index
    %4 = vector.load %arg4[%c0_3, %c0_4] : memref<1x256xf32, #tpu.memory_space<vmem>>, vector<1x256xf32>
    %5 = vector.broadcast %4 : vector<1x256xf32> to vector<256x256xf32>
    %6 = arith.addf %3, %5 : vector<256x256xf32>
    %c0_5 = arith.constant 0 : index
    %c0_6 = arith.constant 0 : index
    %7 = vector.load %arg5[%c0_5, %c0_6] : memref<256x256xf32, #tpu.memory_space<vmem>>, vector<256x256xf32>
    tpu.vector_store %arg5[%c0_5, %c0_6], %6 {strides = array<i32>} : memref<256x256xf32, #tpu.memory_space<vmem>>, vector<256x256xf32>,
    return
  }
  func.func @transform_0(%arg0: i32, %arg1: i32) -> (i32, i32) {
    %c0_i32 = arith.constant 0 : i32
    %c0_i32_0 = arith.constant 0 : i32
    return %arg0, %c0_i32 : i32, i32
  }
  func.func @transform_1(%arg0: i32, %arg1: i32) -> (i32, i32) {
    %c0_i32 = arith.constant 0 : i32
    %c0_i32_0 = arith.constant 0 : i32
    return %c0_i32, %arg1 : i32, i32
  }
  func.func @transform_2(%arg0: i32, %arg1: i32) -> (i32, i32) {
    %c0_i32 = arith.constant 0 : i32
    %c0_i32_0 = arith.constant 0 : i32
    return %c0_i32, %arg1 : i32, i32
  }
  func.func @transform_3(%arg0: i32, %arg1: i32) -> (i32, i32) {
    %c0_i32 = arith.constant 0 : i32
    return %arg0, %arg1 : i32, i32
  }
}

</mosaic_0001>

<llo_original>
// kernel: tpu_custom_call.1
$region0: #{tpu_custom_call.1}
  #allocation0 [shape = 'u32[]', space=smem, size = 0x4, offset = 0x4, fixed_abs, tag = 'smem constant byte address 0x4 - core index']
  #allocation1 [shape = 'u32[144,128]{1,0:T(1,128)}', space=vmem, size = 0x12000, scoped, tag = 'internal scratch']
  %s0 = inlined_call_operand.hbm [shape: f32[256,256], index: 0, kind: input, shape index: {}]
  %s1 = inlined_call_operand.hbm [shape: bf16[256,256], index: 1, kind: input, shape index: {}]
  %s2 = inlined_call_operand.vmem [shape: f32[1,256], index: 2, kind: input, shape index: {}]
  %s3 = inlined_call_operand.hbm [shape: f32[256,256], index: 3, kind: output, shape index: {}]
  %s4 = sld [smem:[#allocation0]]
  $region30: #{tpu_custom_call.1} parent=0
    _
  %s6 = ssub.s32 1, %s4
  %s7 = scalar_select 0, %s6, %s4
  $region1: #{tpu_custom_call.1} parent=0
    #allocation2 [shape = 'u8[262144]{0}', space=vmem, size = 0x40000, scoped, tag = 'input window, operand 0, single buffered']
    #allocation3 [shape = 's32[1]{0}', space=sflag, size = 0x4, scoped, tag = 'scoped memory for tpu_custom_call.1']
    #allocation4 [shape = 's32[1]{0}', space=sflag, size = 0x4, scoped, tag = 'scoped memory for tpu_custom_call.1']
    #allocation5 [shape = 'u8[131072]{0}', space=vmem, size = 0x20000, scoped, tag = 'input window, operand 1, single buffered']
    #allocation6 [shape = 's32[1]{0}', space=sflag, size = 0x4, scoped, tag = 'scoped memory for tpu_custom_call.1']
    #allocation7 [shape = 'u8[262144]{0}', space=vmem, size = 0x40000, scoped, tag = 'output window, operand 0, single buffered']
    %8 = vsyncpa [#allocation3], 0
    %9 = vsyncpa [#allocation6], 0
    %10 = vsyncpa [#allocation4], 0
    // Predicated region
    $region2: #{tpu_custom_call.1} parent=1 // pred_check
      _
    $region3: #{tpu_custom_call.1} parent=1 // pred_check_branch
      %12 = sbr.rel (0) target = $region5
    $region4: #{tpu_custom_call.1} parent=1 // pred_region
      %s14 = ssub.s32 8192, 8192
      %15 = vsyncadd [#allocation3], %s14
      %s16 = sshll.u32 [#allocation2], 4
      %s17 = int_to_ptr.vmem [resolvable:$true] %s16
      %22 = dma.hbm_to_vmem [thread:$0]  %s0, 8192, %s17, [#allocation3], 256, 256, 16
    $region5: #{tpu_custom_call.1} parent=1 // pred_fallthru
      _
    // Predicated region
    $region6: #{tpu_custom_call.1} parent=1 // pred_check
      _
    $region7: #{tpu_custom_call.1} parent=1 // pred_check_branch
      %24 = sbr.rel (0) target = $region9
    $region8: #{tpu_custom_call.1} parent=1 // pred_region
      %s26 = ssub.s32 4096, 4096
      %27 = vsyncadd [#allocation6], %s26
      %s28 = sshll.u32 [#allocation5], 4
      %s29 = int_to_ptr.vmem [resolvable:$true] %s28
      %34 = dma.hbm_to_vmem [thread:$0]  %s1, 4096, %s29, [#allocation6], 128, 128, 8
    $region9: #{tpu_custom_call.1} parent=1 // pred_fallthru
      _
    // Predicated region
    $region10: #{tpu_custom_call.1} parent=1 // pred_check
      _
    $region11: #{tpu_custom_call.1} parent=1 // pred_check_branch
      %36 = sbr.rel (0) target = $region13
    $region12: #{tpu_custom_call.1} parent=1 // pred_region
      _
    $region13: #{tpu_custom_call.1} parent=1 // pred_fallthru
      _
    // Predicated region
    $region14: #{tpu_custom_call.1} parent=1 // pred_check
      _
    $region15: #{tpu_custom_call.1} parent=1 // pred_check_branch
      %38 = sbr.rel (0) target = $region17
    $region16: #{tpu_custom_call.1} parent=1 // pred_region
      %39 = dma.done [#allocation3], 8192
    $region17: #{tpu_custom_call.1} parent=1 // pred_fallthru
      _
    // Predicated region
    $region18: #{tpu_custom_call.1} parent=1 // pred_check
      _
    $region19: #{tpu_custom_call.1} parent=1 // pred_check_branch
      %41 = sbr.rel (0) target = $region21
    $region20: #{tpu_custom_call.1} parent=1 // pred_region
      %42 = dma.done [#allocation6], 4096
    $region21: #{tpu_custom_call.1} parent=1 // pred_fallthru
      _
    %v43 = vld [vmem:[#allocation2] sm:$0xff]
    %v44 = vld [vmem:[#allocation2 + $0x8] sm:$0xff]
    %v45 = vld [vmem:[#allocation2 + $0x10] sm:$0xff]
    %v46 = vld [vmem:[#allocation2 + $0x18] sm:$0xff]
    %v47 = vld [vmem:[#allocation2 + $0x20] sm:$0xff]
    %v48 = vld [vmem:[#allocation2 + $0x28] sm:$0xff]
    %v49 = vld [vmem:[#allocation2 + $0x30] sm:$0xff]
    %v50 = vld [vmem:[#allocation2 + $0x38] sm:$0xff]
    %v51 = vld [vmem:[#allocation2 + $0x40] sm:$0xff]
    %v52 = vld [vmem:[#allocation2 + $0x48] sm:$0xff]
    %v53 = vld [vmem:[#allocation2 + $0x50] sm:$0xff]
    %v54 = vld [vmem:[#allocation2 + $0x58] sm:$0xff]
    %v55 = vld [vmem:[#allocation2 + $0x60] sm:$0xff]
    %v56 = vld [vmem:[#allocation2 + $0x68] sm:$0xff]
    %v57 = vld [vmem:[#allocation2 + $0x70] sm:$0xff]
    %v58 = vld [vmem:[#allocation2 + $0x78] sm:$0xff]
    %v59 = vld [vmem:[#allocation2 + $0x80] sm:$0xff]
    %v60 = vld [vmem:[#allocation2 + $0x88] sm:$0xff]
    %v61 = vld [vmem:[#allocation2 + $0x90] sm:$0xff]
    %v62 = vld [vmem:[#allocation2 + $0x98] sm:$0xff]
    %v63 = vld [vmem:[#allocation2 + $0xa0] sm:$0xff]
    %v64 = vld [vmem:[#allocation2 + $0xa8] sm:$0xff]
    %v65 = vld [vmem:[#allocation2 + $0xb0] sm:$0xff]
    %v66 = vld [vmem:[#allocation2 + $0xb8] sm:$0xff]
    %v67 = vld [vmem:[#allocation2 + $0xc0] sm:$0xff]
    %v68 = vld [vmem:[#allocation2 + $0xc8] sm:$0xff]
    %v69 = vld [vmem:[#allocation2 + $0xd0] sm:$0xff]
    %v70 = vld [vmem:[#allocation2 + $0xd8] sm:$0xff]
    %v71 = vld [vmem:[#allocation2 + $0xe0] sm:$0xff]
    %v72 = vld [vmem:[#allocation2 + $0xe8] sm:$0xff]
    %v73 = vld [vmem:[#allocation2 + $0xf0] sm:$0xff]
    %v74 = vld [vmem:[#allocation2 + $0xf8] sm:$0xff]
    %v75 = vld [vmem:[#allocation2 + $0x100] sm:$0xff]
    %v76 = vld [vmem:[#allocation2 + $0x108] sm:$0xff]
    %v77 = vld [vmem:[#allocation2 + $0x110] sm:$0xff]
    %v78 = vld [vmem:[#allocation2 + $0x118] sm:$0xff]
    %v79 = vld [vmem:[#allocation2 + $0x120] sm:$0xff]
    %v80 = vld [vmem:[#allocation2 + $0x128] sm:$0xff]
    %v81 = vld [vmem:[#allocation2 + $0x130] sm:$0xff]
    %v82 = vld [vmem:[#allocation2 + $0x138] sm:$0xff]
    %v83 = vld [vmem:[#allocation2 + $0x140] sm:$0xff]
    %v84 = vld [vmem:[#allocation2 + $0x148] sm:$0xff]
    %v85 = vld [vmem:[#allocation2 + $0x150] sm:$0xff]
    %v86 = vld [vmem:[#allocation2 + $0x158] sm:$0xff]
    %v87 = vld [vmem:[#allocation2 + $0x160] sm:$0xff]
    %v88 = vld [vmem:[#allocation2 + $0x168] sm:$0xff]
    %v89 = vld [vmem:[#allocation2 + $0x170] sm:$0xff]
    %v90 = vld [vmem:[#allocation2 + $0x178] sm:$0xff]
    %v91 = vld [vmem:[#allocation2 + $0x180] sm:$0xff]
    %v92 = vld [vmem:[#allocation2 + $0x188] sm:$0xff]
    %v93 = vld [vmem:[#allocation2 + $0x190] sm:$0xff]
    %v94 = vld [vmem:[#allocation2 + $0x198] sm:$0xff]
    %v95 = vld [vmem:[#allocation2 + $0x1a0] sm:$0xff]
    %v96 = vld [vmem:[#allocation2 + $0x1a8] sm:$0xff]
    %v97 = vld [vmem:[#allocation2 + $0x1b0] sm:$0xff]
    %v98 = vld [vmem:[#allocation2 + $0x1b8] sm:$0xff]
    %v99 = vld [vmem:[#allocation2 + $0x1c0] sm:$0xff]
    %v100 = vld [vmem:[#allocation2 + $0x1c8] sm:$0xff]
    %v101 = vld [vmem:[#allocation2 + $0x1d0] sm:$0xff]
    %v102 = vld [vmem:[#allocation2 + $0x1d8] sm:$0xff]
    %v103 = vld [vmem:[#allocation2 + $0x1e0] sm:$0xff]
    %v104 = vld [vmem:[#allocation2 + $0x1e8] sm:$0xff]
    %v105 = vld [vmem:[#allocation2 + $0x1f0] sm:$0xff]
    %v106 = vld [vmem:[#allocation2 + $0x1f8] sm:$0xff]
    %v107 = vpack.c.bf16 %v45, %v43
    %v108 = vpack.c.bf16 %v46, %v44
    %v109 = vpack.c.bf16 %v49, %v47
    %v110 = vpack.c.bf16 %v50, %v48
    %v111 = vpack.c.bf16 %v53, %v51
    %v112 = vpack.c.bf16 %v54, %v52
    %v113 = vpack.c.bf16 %v57, %v55
    %v114 = vpack.c.bf16 %v58, %v56
    %v115 = vpack.c.bf16 %v61, %v59
    %v116 = vpack.c.bf16 %v62, %v60
    %v117 = vpack.c.bf16 %v65, %v63
    %v118 = vpack.c.bf16 %v66, %v64
    %v119 = vpack.c.bf16 %v69, %v67
    %v120 = vpack.c.bf16 %v70, %v68
    %v121 = vpack.c.bf16 %v73, %v71
    %v122 = vpack.c.bf16 %v74, %v72
    %v123 = vpack.c.bf16 %v77, %v75
    %v124 = vpack.c.bf16 %v78, %v76
    %v125 = vpack.c.bf16 %v81, %v79
    %v126 = vpack.c.bf16 %v82, %v80
    %v127 = vpack.c.bf16 %v85, %v83
    %v128 = vpack.c.bf16 %v86, %v84
    %v129 = vpack.c.bf16 %v89, %v87
    %v130 = vpack.c.bf16 %v90, %v88
    %v131 = vpack.c.bf16 %v93, %v91
    %v132 = vpack.c.bf16 %v94, %v92
    %v133 = vpack.c.bf16 %v97, %v95
    %v134 = vpack.c.bf16 %v98, %v96
    %v135 = vpack.c.bf16 %v101, %v99
    %v136 = vpack.c.bf16 %v102, %v100
    %v137 = vpack.c.bf16 %v105, %v103
    %v138 = vpack.c.bf16 %v106, %v104
    %v139 = vld [vmem:[#allocation5] sm:$0xff]
    %v140 = vld [vmem:[#allocation5 + $0x8] sm:$0xff]
    %v141 = vld [vmem:[#allocation5 + $0x10] sm:$0xff]
    %v142 = vld [vmem:[#allocation5 + $0x18] sm:$0xff]
    %v143 = vld [vmem:[#allocation5 + $0x20] sm:$0xff]
    %v144 = vld [vmem:[#allocation5 + $0x28] sm:$0xff]
    %v145 = vld [vmem:[#allocation5 + $0x30] sm:$0xff]
    %v146 = vld [vmem:[#allocation5 + $0x38] sm:$0xff]
    %v147 = vld [vmem:[#allocation5 + $0x40] sm:$0xff]
    %v148 = vld [vmem:[#allocation5 + $0x48] sm:$0xff]
    %v149 = vld [vmem:[#allocation5 + $0x50] sm:$0xff]
    %v150 = vld [vmem:[#allocation5 + $0x58] sm:$0xff]
    %v151 = vld [vmem:[#allocation5 + $0x60] sm:$0xff]
    %v152 = vld [vmem:[#allocation5 + $0x68] sm:$0xff]
    %v153 = vld [vmem:[#allocation5 + $0x70] sm:$0xff]
    %v154 = vld [vmem:[#allocation5 + $0x78] sm:$0xff]
    %v155 = vld [vmem:[#allocation5 + $0x80] sm:$0xff]
    %v156 = vld [vmem:[#allocation5 + $0x88] sm:$0xff]
    %v157 = vld [vmem:[#allocation5 + $0x90] sm:$0xff]
    %v158 = vld [vmem:[#allocation5 + $0x98] sm:$0xff]
    %v159 = vld [vmem:[#allocation5 + $0xa0] sm:$0xff]
    %v160 = vld [vmem:[#allocation5 + $0xa8] sm:$0xff]
    %v161 = vld [vmem:[#allocation5 + $0xb0] sm:$0xff]
    %v162 = vld [vmem:[#allocation5 + $0xb8] sm:$0xff]
    %v163 = vld [vmem:[#allocation5 + $0xc0] sm:$0xff]
    %v164 = vld [vmem:[#allocation5 + $0xc8] sm:$0xff]
    %v165 = vld [vmem:[#allocation5 + $0xd0] sm:$0xff]
    %v166 = vld [vmem:[#allocation5 + $0xd8] sm:$0xff]
    %v167 = vld [vmem:[#allocation5 + $0xe0] sm:$0xff]
    %v168 = vld [vmem:[#allocation5 + $0xe8] sm:$0xff]
    %v169 = vld [vmem:[#allocation5 + $0xf0] sm:$0xff]
    %v170 = vld [vmem:[#allocation5 + $0xf8] sm:$0xff]
    %v171 = vld [vmem:[%s2] sm:$0x3]
    %v173 = vlaneseq
    %v174 = vshrl.u32 %v173, 7
    %v175 = vsub.s32 0, %v174
    %v176 = vrot.slane %v171, %v175
    %v177 = vlaneseq
    %v178 = vshrl.u32 %v177, 7
    %v179 = vsub.s32 1, %v178
    %v180 = vrot.slane %v171, %v179
    %v215 = vunpack.c.l.b16 %v139
    %v216 = vunpack.c.h.b16 %v139
    %v217 = vunpack.c.l.b16 %v140
    %v218 = vunpack.c.h.b16 %v140
    %v219 = vunpack.c.l.b16 %v141
    %v220 = vunpack.c.h.b16 %v141
    %v221 = vunpack.c.l.b16 %v142
    %v222 = vunpack.c.h.b16 %v142
    %v223 = vunpack.c.l.b16 %v143
    %v224 = vunpack.c.h.b16 %v143
    %v225 = vunpack.c.l.b16 %v144
    %v226 = vunpack.c.h.b16 %v144
    %v227 = vunpack.c.l.b16 %v145
    %v228 = vunpack.c.h.b16 %v145
    %v229 = vunpack.c.l.b16 %v146
    %v230 = vunpack.c.h.b16 %v146
    %v231 = vunpack.c.l.b16 %v147
    %v232 = vunpack.c.h.b16 %v147
    %v233 = vunpack.c.l.b16 %v148
    %v234 = vunpack.c.h.b16 %v148
    %v235 = vunpack.c.l.b16 %v149
    %v236 = vunpack.c.h.b16 %v149
    %v237 = vunpack.c.l.b16 %v150
    %v238 = vunpack.c.h.b16 %v150
    %v239 = vunpack.c.l.b16 %v151
    %v240 = vunpack.c.h.b16 %v151
    %v241 = vunpack.c.l.b16 %v152
    %v242 = vunpack.c.h.b16 %v152
    %v243 = vunpack.c.l.b16 %v153
    %v244 = vunpack.c.h.b16 %v153
    %v245 = vunpack.c.l.b16 %v154
    %v246 = vunpack.c.h.b16 %v154
    %v247 = vunpack.c.l.b16 %v155
    %v248 = vunpack.c.h.b16 %v155
    %v249 = vunpack.c.l.b16 %v156
    %v250 = vunpack.c.h.b16 %v156
    %v251 = vunpack.c.l.b16 %v157
    %v252 = vunpack.c.h.b16 %v157
    %v253 = vunpack.c.l.b16 %v158
    %v254 = vunpack.c.h.b16 %v158
    %v255 = vunpack.c.l.b16 %v159
    %v256 = vunpack.c.h.b16 %v159
    %v257 = vunpack.c.l.b16 %v160
    %v258 = vunpack.c.h.b16 %v160
    %v259 = vunpack.c.l.b16 %v161
    %v260 = vunpack.c.h.b16 %v161
    %v261 = vunpack.c.l.b16 %v162
    %v262 = vunpack.c.h.b16 %v162
    %v263 = vunpack.c.l.b16 %v163
    %v264 = vunpack.c.h.b16 %v163
    %v265 = vunpack.c.l.b16 %v164
    %v266 = vunpack.c.h.b16 %v164
    %v267 = vunpack.c.l.b16 %v165
    %v268 = vunpack.c.h.b16 %v165
    %v269 = vunpack.c.l.b16 %v166
    %v270 = vunpack.c.h.b16 %v166
    %v271 = vunpack.c.l.b16 %v167
    %v272 = vunpack.c.h.b16 %v167
    %v273 = vunpack.c.l.b16 %v168
    %v274 = vunpack.c.h.b16 %v168
    %v275 = vunpack.c.l.b16 %v169
    %v276 = vunpack.c.h.b16 %v169
    %v277 = vunpack.c.l.b16 %v170
    %v278 = vunpack.c.h.b16 %v170
    %v279 = vpack.c.b16 %v217, %v215
    %v280 = vpack.c.b16 %v218, %v216
    %v281 = vpack.c.b16 %v221, %v219
    %v282 = vpack.c.b16 %v222, %v220
    %v283 = vpack.c.b16 %v225, %v223
    %v284 = vpack.c.b16 %v226, %v224
    %v285 = vpack.c.b16 %v229, %v227
    %v286 = vpack.c.b16 %v230, %v228
    %v287 = vpack.c.b16 %v233, %v231
    %v288 = vpack.c.b16 %v234, %v232
    %v289 = vpack.c.b16 %v237, %v235
    %v290 = vpack.c.b16 %v238, %v236
    %v291 = vpack.c.b16 %v241, %v239
    %v292 = vpack.c.b16 %v242, %v240
    %v293 = vpack.c.b16 %v245, %v243
    %v294 = vpack.c.b16 %v246, %v244
    %v295 = vpack.c.b16 %v249, %v247
    %v296 = vpack.c.b16 %v250, %v248
    %v297 = vpack.c.b16 %v253, %v251
    %v298 = vpack.c.b16 %v254, %v252
    %v299 = vpack.c.b16 %v257, %v255
    %v300 = vpack.c.b16 %v258, %v256
    %v301 = vpack.c.b16 %v261, %v259
    %v302 = vpack.c.b16 %v262, %v260
    %v303 = vpack.c.b16 %v265, %v263
    %v304 = vpack.c.b16 %v266, %v264
    %v305 = vpack.c.b16 %v269, %v267
    %v306 = vpack.c.b16 %v270, %v268
    %v307 = vpack.c.b16 %v273, %v271
    %v308 = vpack.c.b16 %v274, %v272
    %v309 = vpack.c.b16 %v277, %v275
    %v310 = vpack.c.b16 %v278, %v276
    %343 = vmatprep.subr.bf16.mxu0 %v294
    %344 = vmatpush1.bf16.msra.mxu0 %v293
    %345 = vmatprep.subr.bf16.mxu0 %v292
    %346 = vmatpush1.bf16.msra.mxu0 %v291
    %347 = vmatprep.subr.bf16.mxu0 %v290
    %348 = vmatpush1.bf16.msra.mxu0 %v289
    %349 = vmatprep.subr.bf16.mxu0 %v288
    %350 = vmatpush1.bf16.msra.mxu0 %v287
    %351 = vmatprep.subr.bf16.mxu0 %v286
    %352 = vmatpush1.bf16.msra.mxu0 %v285
    %353 = vmatprep.subr.bf16.mxu0 %v284
    %354 = vmatpush1.bf16.msra.mxu0 %v283
    %355 = vmatprep.subr.bf16.mxu0 %v282
    %356 = vmatpush1.bf16.msra.mxu0 %v281
    %357 = vmatprep.subr.bf16.mxu0 %v280
    %358 = vmatpush1.bf16.msra.mxu0 %v279
    %359 = vmatprep.subr.bf16.mxu0 %v310
    %360 = vmatpush2.bf16.msra.mxu0 %v309
    %361 = vmatprep.subr.bf16.mxu0 %v308
    %362 = vmatpush2.bf16.msra.mxu0 %v307
    %363 = vmatprep.subr.bf16.mxu0 %v306
    %364 = vmatpush2.bf16.msra.mxu0 %v305
    %365 = vmatprep.subr.bf16.mxu0 %v304
    %366 = vmatpush2.bf16.msra.mxu0 %v303
    %367 = vmatprep.subr.bf16.mxu0 %v302
    %368 = vmatpush2.bf16.msra.mxu0 %v301
    %369 = vmatprep.subr.bf16.mxu0 %v300
    %370 = vmatpush2.bf16.msra.mxu0 %v299
    %371 = vmatprep.subr.bf16.mxu0 %v298
    %372 = vmatpush2.bf16.msra.mxu0 %v297
    %373 = vmatprep.subr.bf16.mxu0 %v296
    %374 = vmatpush2.bf16.msra.mxu0 %v295
    %375 = vmatprep.mubr.bf16.mxu0 %v108
    %376 = vmatmul.mubr.bf16.gmra.mxu0 %v107
    %v377 = vpop.f32.mrf.mxu0
    %v378 = vadd.f32 %v176, %v377
    %v379 = vpop.f32.mrf.mxu0
    %v380 = vadd.f32 %v180, %v379
    %v381 = vpop.f32.mrf.mxu0
    %v382 = vadd.f32 %v176, %v381
    %v383 = vpop.f32.mrf.mxu0
    %v384 = vadd.f32 %v180, %v383
    %385 = vmatprep.mubr.bf16.mxu0 %v110
    %386 = vmatmul.mubr.bf16.gmra.mxu0 %v109
    %v387 = vpop.f32.mrf.mxu0
    %v388 = vadd.f32 %v176, %v387
    %v389 = vpop.f32.mrf.mxu0
    %v390 = vadd.f32 %v180, %v389
    %v391 = vpop.f32.mrf.mxu0
    %v392 = vadd.f32 %v176, %v391
    %v393 = vpop.f32.mrf.mxu0
    %v394 = vadd.f32 %v180, %v393
    %395 = vmatprep.mubr.bf16.mxu0 %v112
    %396 = vmatmul.mubr.bf16.gmra.mxu0 %v111
    %v397 = vpop.f32.mrf.mxu0
    %v398 = vadd.f32 %v176, %v397
    %v399 = vpop.f32.mrf.mxu0
    %v400 = vadd.f32 %v180, %v399
    %v401 = vpop.f32.mrf.mxu0
    %v402 = vadd.f32 %v176, %v401
    %v403 = vpop.f32.mrf.mxu0
    %v404 = vadd.f32 %v180, %v403
    %405 = vmatprep.mubr.bf16.mxu0 %v114
    %406 = vmatmul.mubr.bf16.gmra.mxu0 %v113
    %v407 = vpop.f32.mrf.mxu0
    %v408 = vadd.f32 %v176, %v407
    %v409 = vpop.f32.mrf.mxu0
    %v410 = vadd.f32 %v180, %v409
    %v411 = vpop.f32.mrf.mxu0
    %v412 = vadd.f32 %v176, %v411
    %v413 = vpop.f32.mrf.mxu0
    %v414 = vadd.f32 %v180, %v413
    %415 = vmatprep.mubr.bf16.mxu0 %v116
    %416 = vmatmul.mubr.bf16.gmra.mxu0 %v115
    %v417 = vpop.f32.mrf.mxu0
    %v418 = vadd.f32 %v176, %v417
    %v419 = vpop.f32.mrf.mxu0
    %v420 = vadd.f32 %v180, %v419
    %v421 = vpop.f32.mrf.mxu0
    %v422 = vadd.f32 %v176, %v421
    %v423 = vpop.f32.mrf.mxu0
    %v424 = vadd.f32 %v180, %v423
    %425 = vmatprep.mubr.bf16.mxu0 %v118
    %426 = vmatmul.mubr.bf16.gmra.mxu0 %v117
    %v427 = vpop.f32.mrf.mxu0
    %v428 = vadd.f32 %v176, %v427
    %v429 = vpop.f32.mrf.mxu0
    %v430 = vadd.f32 %v180, %v429
    %v431 = vpop.f32.mrf.mxu0
    %v432 = vadd.f32 %v176, %v431
    %v433 = vpop.f32.mrf.mxu0
    %v434 = vadd.f32 %v180, %v433
    %435 = vmatprep.mubr.bf16.mxu0 %v120
    %436 = vmatmul.mubr.bf16.gmra.mxu0 %v119
    %v437 = vpop.f32.mrf.mxu0
    %v438 = vadd.f32 %v176, %v437
    %v439 = vpop.f32.mrf.mxu0
    %v440 = vadd.f32 %v180, %v439
    %v441 = vpop.f32.mrf.mxu0
    %v442 = vadd.f32 %v176, %v441
    %v443 = vpop.f32.mrf.mxu0
    %v444 = vadd.f32 %v180, %v443
    %445 = vmatprep.mubr.bf16.mxu0 %v122
    %446 = vmatmul.mubr.bf16.gmra.mxu0 %v121
    %v447 = vpop.f32.mrf.mxu0
    %v448 = vadd.f32 %v176, %v447
    %v449 = vpop.f32.mrf.mxu0
    %v450 = vadd.f32 %v180, %v449
    %v451 = vpop.f32.mrf.mxu0
    %v452 = vadd.f32 %v176, %v451
    %v453 = vpop.f32.mrf.mxu0
    %v454 = vadd.f32 %v180, %v453
    %455 = vmatprep.mubr.bf16.mxu0 %v124
    %456 = vmatmul.mubr.bf16.gmra.mxu0 %v123
    %v457 = vpop.f32.mrf.mxu0
    %v458 = vadd.f32 %v176, %v457
    %v459 = vpop.f32.mrf.mxu0
    %v460 = vadd.f32 %v180, %v459
    %v461 = vpop.f32.mrf.mxu0
    %v462 = vadd.f32 %v176, %v461
    %v463 = vpop.f32.mrf.mxu0
    %v464 = vadd.f32 %v180, %v463
    %465 = vmatprep.mubr.bf16.mxu0 %v126
    %466 = vmatmul.mubr.bf16.gmra.mxu0 %v125
    %v467 = vpop.f32.mrf.mxu0
    %v468 = vadd.f32 %v176, %v467
    %v469 = vpop.f32.mrf.mxu0
    %v470 = vadd.f32 %v180, %v469
    %v471 = vpop.f32.mrf.mxu0
    %v472 = vadd.f32 %v176, %v471
    %v473 = vpop.f32.mrf.mxu0
    %v474 = vadd.f32 %v180, %v473
    %475 = vmatprep.mubr.bf16.mxu0 %v128
    %476 = vmatmul.mubr.bf16.gmra.mxu0 %v127
    %v477 = vpop.f32.mrf.mxu0
    %v478 = vadd.f32 %v176, %v477
    %v479 = vpop.f32.mrf.mxu0
    %v480 = vadd.f32 %v180, %v479
    %v481 = vpop.f32.mrf.mxu0
    %v482 = vadd.f32 %v176, %v481
    %v483 = vpop.f32.mrf.mxu0
    %v484 = vadd.f32 %v180, %v483
    %485 = vmatprep.mubr.bf16.mxu0 %v130
    %486 = vmatmul.mubr.bf16.gmra.mxu0 %v129
    %v487 = vpop.f32.mrf.mxu0
    %v488 = vadd.f32 %v176, %v487
    %v489 = vpop.f32.mrf.mxu0
    %v490 = vadd.f32 %v180, %v489
    %v491 = vpop.f32.mrf.mxu0
    %v492 = vadd.f32 %v176, %v491
    %v493 = vpop.f32.mrf.mxu0
    %v494 = vadd.f32 %v180, %v493
    %495 = vmatprep.mubr.bf16.mxu0 %v132
    %496 = vmatmul.mubr.bf16.gmra.mxu0 %v131
    %v497 = vpop.f32.mrf.mxu0
    %v498 = vadd.f32 %v176, %v497
    %v499 = vpop.f32.mrf.mxu0
    %v500 = vadd.f32 %v180, %v499
    %v501 = vpop.f32.mrf.mxu0
    %v502 = vadd.f32 %v176, %v501
    %v503 = vpop.f32.mrf.mxu0
    %v504 = vadd.f32 %v180, %v503
    %505 = vmatprep.mubr.bf16.mxu0 %v134
    %506 = vmatmul.mubr.bf16.gmra.mxu0 %v133
    %v507 = vpop.f32.mrf.mxu0
    %v508 = vadd.f32 %v176, %v507
    %v509 = vpop.f32.mrf.mxu0
    %v510 = vadd.f32 %v180, %v509
    %v511 = vpop.f32.mrf.mxu0
    %v512 = vadd.f32 %v176, %v511
    %v513 = vpop.f32.mrf.mxu0
    %v514 = vadd.f32 %v180, %v513
    %515 = vmatprep.mubr.bf16.mxu0 %v136
    %516 = vmatmul.mubr.bf16.gmra.mxu0 %v135
    %v517 = vpop.f32.mrf.mxu0
    %v518 = vadd.f32 %v176, %v517
    %v519 = vpop.f32.mrf.mxu0
    %v520 = vadd.f32 %v180, %v519
    %v521 = vpop.f32.mrf.mxu0
    %v522 = vadd.f32 %v176, %v521
    %v523 = vpop.f32.mrf.mxu0
    %v524 = vadd.f32 %v180, %v523
    %525 = vmatprep.mubr.bf16.mxu0 %v138
    %526 = vmatmul.mubr.bf16.gmra.mxu0 %v137
    %v527 = vpop.f32.mrf.mxu0
    %v528 = vadd.f32 %v176, %v527
    %v529 = vpop.f32.mrf.mxu0
    %v530 = vadd.f32 %v180, %v529
    %v531 = vpop.f32.mrf.mxu0
    %v532 = vadd.f32 %v176, %v531
    %v533 = vpop.f32.mrf.mxu0
    %v534 = vadd.f32 %v180, %v533
    %535 = vdwg.mxu0
    %536 = vst [vmem:[#allocation7] sm:$0xff] %v378
    %537 = vst [vmem:[#allocation7 + $0x8] sm:$0xff] %v380
    %538 = vst [vmem:[#allocation7 + $0x10] sm:$0xff] %v382
    %539 = vst [vmem:[#allocation7 + $0x18] sm:$0xff] %v384
    %540 = vst [vmem:[#allocation7 + $0x20] sm:$0xff] %v388
    %541 = vst [vmem:[#allocation7 + $0x28] sm:$0xff] %v390
    %542 = vst [vmem:[#allocation7 + $0x30] sm:$0xff] %v392
    %543 = vst [vmem:[#allocation7 + $0x38] sm:$0xff] %v394
    %544 = vst [vmem:[#allocation7 + $0x40] sm:$0xff] %v398
    %545 = vst [vmem:[#allocation7 + $0x48] sm:$0xff] %v400
    %546 = vst [vmem:[#allocation7 + $0x50] sm:$0xff] %v402
    %547 = vst [vmem:[#allocation7 + $0x58] sm:$0xff] %v404
    %548 = vst [vmem:[#allocation7 + $0x60] sm:$0xff] %v408
    %549 = vst [vmem:[#allocation7 + $0x68] sm:$0xff] %v410
    %550 = vst [vmem:[#allocation7 + $0x70] sm:$0xff] %v412
    %551 = vst [vmem:[#allocation7 + $0x78] sm:$0xff] %v414
    %552 = vst [vmem:[#allocation7 + $0x80] sm:$0xff] %v418
    %553 = vst [vmem:[#allocation7 + $0x88] sm:$0xff] %v420
    %554 = vst [vmem:[#allocation7 + $0x90] sm:$0xff] %v422
    %555 = vst [vmem:[#allocation7 + $0x98] sm:$0xff] %v424
    %556 = vst [vmem:[#allocation7 + $0xa0] sm:$0xff] %v428
    %557 = vst [vmem:[#allocation7 + $0xa8] sm:$0xff] %v430
    %558 = vst [vmem:[#allocation7 + $0xb0] sm:$0xff] %v432
    %559 = vst [vmem:[#allocation7 + $0xb8] sm:$0xff] %v434
    %560 = vst [vmem:[#allocation7 + $0xc0] sm:$0xff] %v438
    %561 = vst [vmem:[#allocation7 + $0xc8] sm:$0xff] %v440
    %562 = vst [vmem:[#allocation7 + $0xd0] sm:$0xff] %v442
    %563 = vst [vmem:[#allocation7 + $0xd8] sm:$0xff] %v444
    %564 = vst [vmem:[#allocation7 + $0xe0] sm:$0xff] %v448
    %565 = vst [vmem:[#allocation7 + $0xe8] sm:$0xff] %v450
    %566 = vst [vmem:[#allocation7 + $0xf0] sm:$0xff] %v452
    %567 = vst [vmem:[#allocation7 + $0xf8] sm:$0xff] %v454
    %568 = vst [vmem:[#allocation7 + $0x100] sm:$0xff] %v458
    %569 = vst [vmem:[#allocation7 + $0x108] sm:$0xff] %v460
    %570 = vst [vmem:[#allocation7 + $0x110] sm:$0xff] %v462
    %571 = vst [vmem:[#allocation7 + $0x118] sm:$0xff] %v464
    %572 = vst [vmem:[#allocation7 + $0x120] sm:$0xff] %v468
    %573 = vst [vmem:[#allocation7 + $0x128] sm:$0xff] %v470
    %574 = vst [vmem:[#allocation7 + $0x130] sm:$0xff] %v472
    %575 = vst [vmem:[#allocation7 + $0x138] sm:$0xff] %v474
    %576 = vst [vmem:[#allocation7 + $0x140] sm:$0xff] %v478
    %577 = vst [vmem:[#allocation7 + $0x148] sm:$0xff] %v480
    %578 = vst [vmem:[#allocation7 + $0x150] sm:$0xff] %v482
    %579 = vst [vmem:[#allocation7 + $0x158] sm:$0xff] %v484
    %580 = vst [vmem:[#allocation7 + $0x160] sm:$0xff] %v488
    %581 = vst [vmem:[#allocation7 + $0x168] sm:$0xff] %v490
    %582 = vst [vmem:[#allocation7 + $0x170] sm:$0xff] %v492
    %583 = vst [vmem:[#allocation7 + $0x178] sm:$0xff] %v494
    %584 = vst [vmem:[#allocation7 + $0x180] sm:$0xff] %v498
    %585 = vst [vmem:[#allocation7 + $0x188] sm:$0xff] %v500
    %586 = vst [vmem:[#allocation7 + $0x190] sm:$0xff] %v502
    %587 = vst [vmem:[#allocation7 + $0x198] sm:$0xff] %v504
    %588 = vst [vmem:[#allocation7 + $0x1a0] sm:$0xff] %v508
    %589 = vst [vmem:[#allocation7 + $0x1a8] sm:$0xff] %v510
    %590 = vst [vmem:[#allocation7 + $0x1b0] sm:$0xff] %v512
    %591 = vst [vmem:[#allocation7 + $0x1b8] sm:$0xff] %v514
    %592 = vst [vmem:[#allocation7 + $0x1c0] sm:$0xff] %v518
    %593 = vst [vmem:[#allocation7 + $0x1c8] sm:$0xff] %v520
    %594 = vst [vmem:[#allocation7 + $0x1d0] sm:$0xff] %v522
    %595 = vst [vmem:[#allocation7 + $0x1d8] sm:$0xff] %v524
    %596 = vst [vmem:[#allocation7 + $0x1e0] sm:$0xff] %v528
    %597 = vst [vmem:[#allocation7 + $0x1e8] sm:$0xff] %v530
    %598 = vst [vmem:[#allocation7 + $0x1f0] sm:$0xff] %v532
    %599 = vst [vmem:[#allocation7 + $0x1f8] sm:$0xff] %v534
    // Predicated region
    $region22: #{tpu_custom_call.1} parent=1 // pred_check
      _
    $region23: #{tpu_custom_call.1} parent=1 // pred_check_branch
      %601 = sbr.rel (0) target = $region25
    $region24: #{tpu_custom_call.1} parent=1 // pred_region
      %s603 = ssub.s32 8192, 8192
      %604 = vsyncadd [#allocation4], %s603
      %s605 = sshll.u32 [#allocation7], 4
      %s606 = int_to_ptr.vmem [resolvable:$true] %s605
      %611 = dma.vmem_to_hbm [thread:$0]  %s606, 8192, %s3, [#allocation4], 256, 256, 16
    $region25: #{tpu_custom_call.1} parent=1 // pred_fallthru
      _
    // Predicated region
    $region26: #{tpu_custom_call.1} parent=1 // pred_check
      _
    $region27: #{tpu_custom_call.1} parent=1 // pred_check_branch
      %613 = sbr.rel (0) target = $region29
    $region28: #{tpu_custom_call.1} parent=1 // pred_region
      %614 = dma.done [#allocation4], 8192
    $region29: #{tpu_custom_call.1} parent=1 // pred_fallthru
      _
    %615 = vsyncpa [#allocation3], 1
    %616 = vsyncpa [#allocation6], 1
    %617 = vsyncpa [#allocation4], 1

</llo_original>
